<compile_context>
chip_gen: v5e
topology: v5e:2x2
jax: 0.10.0
libtpu: 0.0.40
codegen_flags: <defaults>
</compile_context>

<pallas_src>
import functools

import jax
import jax.numpy as jnp
import numpy as np
from jax.experimental import pallas as pl
from jax.experimental.pallas import tpu as pltpu

BN_EPS = 1e-5
LANE = 128  # lane width; feature tiles are one lane-dense vreg column block


def _mlp_enc_kernel(x_ref, w_ref, gamma_ref, beta_ref, bits_ref, o_ref, *,
                    dropout_p: float, keep_threshold: int):
    # ---- Linear (bias omitted: cancelled exactly by batch-mean subtraction) ---
    y = jnp.dot(x_ref[...], w_ref[...], preferred_element_type=jnp.float32)  # (N, TD)

    # ---- BatchNorm1d, training mode: one-pass batch stats (biased variance) ---
    inv_n = 1.0 / y.shape[0]
    mean = jnp.sum(y, axis=0, keepdims=True) * inv_n                     # (1, TD)
    var = jnp.sum(y * y, axis=0, keepdims=True) * inv_n - mean * mean    # E[y^2]-E[y]^2
    var = jnp.maximum(var, 0.0)                                          # guard fp cancellation
    g = gamma_ref[...] * jax.lax.rsqrt(var + BN_EPS)                     # gamma / std

    # ---- Fuse BN affine with dropout's 1/(1-p) scaling into one scale/shift ---
    inv_keep = 1.0 / (1.0 - dropout_p) if dropout_p > 0.0 else 1.0
    scale = g * inv_keep                                                 # (1, TD)
    shift = (beta_ref[...] - mean * g) * inv_keep                        # (1, TD)
    out = y * scale + shift                                              # one full-tile FMA

    # ---- Dropout: integer-threshold keep mask on precomputed random bits ------
    if dropout_p > 0.0:
        keep = bits_ref[...] >= keep_threshold                           # bits uniform [0, 2^31)
        out = jnp.where(keep, out, 0.0)

    o_ref[...] = out.astype(o_ref.dtype)


def one_layer_mlp_enc(x, w, b, gamma, beta, rng_key, *, dropout_p=0.25):
    """Forward pass of OneLayerMLPEnc (training mode).

    x: (N, D_in) f32; w: (D_in, D_out) f32 (pre-transposed from torch's (out,in));
    b: (1, D_out) Linear bias — accepted for API parity but mathematically a
       no-op under training-mode BatchNorm, so it is not sent to the kernel;
    gamma/beta: (1, D_out) BatchNorm affine; rng_key: jax PRNG key for dropout.
    """
    assert 0.0 <= dropout_p < 1.0, "dropout_p must be in [0, 1)"
    del b  # cancelled by batch-mean subtraction inside BatchNorm (training mode)

    N, D_in = x.shape
    D_out = w.shape[1]

    # Pad the feature axis to a multiple of 128 -> lane-dense stores, exact BN
    # semantics per feature (padded columns have gamma=beta=0 -> output 0).
    n_tiles = (D_out + LANE - 1) // LANE
    d_pad = n_tiles * LANE
    pad = d_pad - D_out
    if pad:
        w = jnp.pad(w, ((0, 0), (0, pad)))
        gamma = jnp.pad(gamma, ((0, 0), (0, pad)))
        beta = jnp.pad(beta, ((0, 0), (0, pad)))

    # Random bits for dropout, generated with the standard JAX PRNG so the
    # kernel contains only portable vector ops (runs on TPU and in interpret).
    bits = (jax.random.bits(rng_key, (N, d_pad), dtype=jnp.uint32) >> 1).astype(jnp.int32)
    keep_threshold = int(round(dropout_p * float(2 ** 31)))

    kernel = functools.partial(_mlp_enc_kernel,
                               dropout_p=float(dropout_p),
                               keep_threshold=keep_threshold)

    out = pl.pallas_call(
        kernel,
        out_shape=jax.ShapeDtypeStruct((N, d_pad), jnp.float32),
        grid=(n_tiles,),
        in_specs=[
            pl.BlockSpec((N, D_in), lambda d: (0, 0)),      # x: full batch every tile
            pl.BlockSpec((D_in, LANE), lambda d: (0, d)),   # w feature block
            pl.BlockSpec((1, LANE), lambda d: (0, d)),      # gamma block
            pl.BlockSpec((1, LANE), lambda d: (0, d)),      # beta block
            pl.BlockSpec((N, LANE), lambda d: (0, d)),      # dropout bits block
        ],
        out_specs=pl.BlockSpec((N, LANE), lambda d: (0, d)),
        compiler_params=pltpu.CompilerParams(
            dimension_semantics=("parallel",)),             # feature tiles are independent
    )(x, w, gamma, beta, bits)

    return out[:, :D_out]


def _reference_no_dropout(x, w, b, gamma, beta):
    # Bias-including reference: also validates that dropping the bias in the
    # kernel is exact under training-mode BatchNorm.
    y = x @ w + b
    mean = jnp.mean(y, axis=0, keepdims=True)
    var = jnp.mean(jnp.square(y - mean), axis=0, keepdims=True)
    return (y - mean) * jax.lax.rsqrt(var + BN_EPS) * gamma + beta


if __name__ == "__main__":
    # Small shapes consistent with the module: batch=8, input_dim=32, output_dim=64.
    N, D_IN, D_OUT = 8, 32, 64

    key = jax.random.PRNGKey(0)
    kx, kw, kb, kd = jax.random.split(key, 4)

    x = jax.random.normal(kx, (N, D_IN), dtype=jnp.float32)

    # Deterministic parameter init mimicking nn.Linear's uniform(-1/sqrt(in), 1/sqrt(in)).
    bound = 1.0 / np.sqrt(D_IN)
    w = jax.random.uniform(kw, (D_IN, D_OUT), minval=-bound, maxval=bound,
                           dtype=jnp.float32)          # already (in, out) layout
    b = jax.random.uniform(kb, (1, D_OUT), minval=-bound, maxval=bound,
                           dtype=jnp.float32)
    gamma = jnp.ones((1, D_OUT), dtype=jnp.float32)    # BatchNorm1d affine init
    beta = jnp.zeros((1, D_OUT), dtype=jnp.float32)

    # Deterministic-path check (dropout_p=0) against a JAX reference that DOES
    # include the bias — confirms both the BN math and the bias cancellation.
    out_nodrop = one_layer_mlp_enc(x, w, b, gamma, beta, kd, dropout_p=0.0)
    ref = _reference_no_dropout(x, w, b, gamma, beta)
    np.testing.assert_allclose(np.asarray(out_nodrop), np.asarray(ref),
                               rtol=1e-4, atol=1e-4)

    # Full forward (module default dropout_p=0.25, training-mode semantics).
    out = one_layer_mlp_enc(x, w, b, gamma, beta, kd, dropout_p=0.25)
    jax.block_until_ready(out)
    assert out.shape == (N, D_OUT)
    print("KERNEL_OK")
</pallas_src>

<mosaic_0001>
module attributes {stable_mosaic.version = 11 : i64} {
  func.func @_mlp_enc_kernel(%arg0: i32, %arg1: memref<8x32xf32, #tpu.memory_space<vmem>>, %arg2: memref<32x128xf32, #tpu.memory_space<vmem>>, %arg3: memref<1x128xf32, #tpu.memory_space<vmem>>, %arg4: memref<1x128xf32, #tpu.memory_space<vmem>>, %arg5: memref<8x128xi32, #tpu.memory_space<vmem>>, %arg6: memref<8x128xf32, #tpu.memory_space<vmem>>) attributes {dimension_semantics = [#tpu.dimension_semantics<parallel>], iteration_bounds = array<i64: 1>, scalar_prefetch = 0 : i64, scratch_operands = 0 : i64, tpu.core_type = #tpu.core_type<tc>, window_params = [{pipeline_mode = #tpu.pipeline_mode<synchronous>, transform_indices = @transform_0, window_bounds = array<i64: 8, 32>}, {transform_indices = @transform_1, window_bounds = array<i64: 32, 128>}, {transform_indices = @transform_2, window_bounds = array<i64: 1, 128>}, {transform_indices = @transform_3, window_bounds = array<i64: 1, 128>}, {transform_indices = @transform_4, window_bounds = array<i64: 8, 128>}, {transform_indices = @transform_5, window_bounds = array<i64: 8, 128>}]} {
    %c0 = arith.constant 0 : index
    %c0_0 = arith.constant 0 : index
    %0 = vector.load %arg1[%c0, %c0_0] : memref<8x32xf32, #tpu.memory_space<vmem>>, vector<8x32xf32>
    %c0_1 = arith.constant 0 : index
    %c0_2 = arith.constant 0 : index
    %1 = vector.load %arg2[%c0_1, %c0_2] : memref<32x128xf32, #tpu.memory_space<vmem>>, vector<32x128xf32>
    %cst = arith.constant dense<0.000000e+00> : vector<8x128xf32>
    %2 = tpu.matmul %0, %1, %cst {dimension_numbers = #tpu.dot_dimension_numbers<[1], [0], [0], [1], [0, 0, 1, 1], [], []>} : vector<8x32xf32>, vector<32x128xf32>, vector<8x128xf32> -> vector<8x128xf32>
    %cst_3 = arith.constant dense<0.000000e+00> : vector<128xf32>
    %3 = vector.multi_reduction <add>, %2, %cst_3 [0] : vector<8x128xf32> to vector<128xf32>
    %4 = vector.shape_cast %3 : vector<128xf32> to vector<1x128xf32>
    %cst_4 = arith.constant 1.250000e-01 : f32
    %5 = vector.broadcast %cst_4 : f32 to vector<1x128xf32>
    %6 = arith.mulf %4, %5 : vector<1x128xf32>
    %7 = arith.mulf %2, %2 : vector<8x128xf32>
    %cst_5 = arith.constant dense<0.000000e+00> : vector<128xf32>
    %8 = vector.multi_reduction <add>, %7, %cst_5 [0] : vector<8x128xf32> to vector<128xf32>
    %9 = vector.shape_cast %8 : vector<128xf32> to vector<1x128xf32>
    %cst_6 = arith.constant 1.250000e-01 : f32
    %10 = vector.broadcast %cst_6 : f32 to vector<1x128xf32>
    %11 = arith.mulf %9, %10 : vector<1x128xf32>
    %12 = arith.mulf %6, %6 : vector<1x128xf32>
    %13 = arith.subf %11, %12 : vector<1x128xf32>
    %cst_7 = arith.constant 0.000000e+00 : f32
    %14 = vector.broadcast %cst_7 : f32 to vector<1x128xf32>
    %15 = arith.maximumf %13, %14 : vector<1x128xf32>
    %c0_8 = arith.constant 0 : index
    %c0_9 = arith.constant 0 : index
    %16 = vector.load %arg3[%c0_8, %c0_9] : memref<1x128xf32, #tpu.memory_space<vmem>>, vector<1x128xf32>
    %cst_10 = arith.constant 9.99999974E-6 : f32
    %17 = vector.broadcast %cst_10 : f32 to vector<1x128xf32>
    %18 = arith.addf %15, %17 : vector<1x128xf32>
    %19 = math.rsqrt %18 : vector<1x128xf32>
    %20 = arith.mulf %16, %19 : vector<1x128xf32>
    %cst_11 = arith.constant 1.000000e+00 : f32
    %21 = vector.broadcast %cst_11 : f32 to vector<1x128xf32>
    %22 = arith.mulf %20, %21 : vector<1x128xf32>
    %c0_12 = arith.constant 0 : index
    %c0_13 = arith.constant 0 : index
    %23 = vector.load %arg4[%c0_12, %c0_13] : memref<1x128xf32, #tpu.memory_space<vmem>>, vector<1x128xf32>
    %24 = arith.mulf %6, %20 : vector<1x128xf32>
    %25 = arith.subf %23, %24 : vector<1x128xf32>
    %cst_14 = arith.constant 1.000000e+00 : f32
    %26 = vector.broadcast %cst_14 : f32 to vector<1x128xf32>
    %27 = arith.mulf %25, %26 : vector<1x128xf32>
    %28 = vector.broadcast %22 : vector<1x128xf32> to vector<8x128xf32>
    %29 = arith.mulf %2, %28 : vector<8x128xf32>
    %30 = vector.broadcast %27 : vector<1x128xf32> to vector<8x128xf32>
    %31 = arith.addf %29, %30 : vector<8x128xf32>
    %c0_15 = arith.constant 0 : index
    %c0_16 = arith.constant 0 : index
    %32 = vector.load %arg6[%c0_15, %c0_16] : memref<8x128xf32, #tpu.memory_space<vmem>>, vector<8x128xf32>
    tpu.vector_store %arg6[%c0_15, %c0_16], %31 {strides = array<i32>} : memref<8x128xf32, #tpu.memory_space<vmem>>, vector<8x128xf32>,
    return
  }
  func.func @transform_0(%arg0: i32) -> (i32, i32) {
    %c0_i32 = arith.constant 0 : i32
    %c0_i32_0 = arith.constant 0 : i32
    %c0_i32_1 = arith.constant 0 : i32
    return %c0_i32, %c0_i32_0 : i32, i32
  }
  func.func @transform_1(%arg0: i32) -> (i32, i32) {
    %c0_i32 = arith.constant 0 : i32
    %c0_i32_0 = arith.constant 0 : i32
    return %c0_i32, %arg0 : i32, i32
  }
  func.func @transform_2(%arg0: i32) -> (i32, i32) {
    %c0_i32 = arith.constant 0 : i32
    %c0_i32_0 = arith.constant 0 : i32
    return %c0_i32, %arg0 : i32, i32
  }
  func.func @transform_3(%arg0: i32) -> (i32, i32) {
    %c0_i32 = arith.constant 0 : i32
    %c0_i32_0 = arith.constant 0 : i32
    return %c0_i32, %arg0 : i32, i32
  }
  func.func @transform_4(%arg0: i32) -> (i32, i32) {
    %c0_i32 = arith.constant 0 : i32
    %c0_i32_0 = arith.constant 0 : i32
    return %c0_i32, %arg0 : i32, i32
  }
  func.func @transform_5(%arg0: i32) -> (i32, i32) {
    %c0_i32 = arith.constant 0 : i32
    %c0_i32_0 = arith.constant 0 : i32
    return %c0_i32, %arg0 : i32, i32
  }
}

</mosaic_0001>

<llo_original>
// kernel: tpu_custom_call.1
$region0: #{tpu_custom_call.1}
  #allocation0 [shape = 'u32[]', space=smem, size = 0x4, offset = 0x4, fixed_abs, tag = 'smem constant byte address 0x4 - core index']
  #allocation1 [shape = 'u32[72,128]{1,0:T(1,128)}', space=vmem, size = 0x9000, scoped, tag = 'internal scratch']
  %s0 = inlined_call_operand.hbm [shape: f32[8,32], index: 0, kind: input, shape index: {}]
  %s1 = inlined_call_operand.hbm [shape: f32[32,128], index: 1, kind: input, shape index: {}]
  %s2 = inlined_call_operand.vmem [shape: f32[1,128], index: 2, kind: input, shape index: {}]
  %s3 = inlined_call_operand.vmem [shape: f32[1,128], index: 3, kind: input, shape index: {}]
  %s4 = inlined_call_operand.hbm [shape: s32[8,128], index: 4, kind: input, shape index: {}]
  %s5 = inlined_call_operand.hbm [shape: f32[8,128], index: 5, kind: output, shape index: {}]
  %s6 = sld [smem:[#allocation0]]
  $region42: #{tpu_custom_call.1} parent=0
    _
  %s8 = ssub.s32 1, %s6
  %s9 = scalar_select 0, %s8, %s6
  $region1: #{tpu_custom_call.1} parent=0
    #allocation2 [shape = 'u8[4096]{0}', space=vmem, size = 0x1000, scoped, tag = 'input window, operand 0, single buffered']
    #allocation3 [shape = 's32[1]{0}', space=sflag, size = 0x4, scoped, tag = 'scoped memory for tpu_custom_call.1']
    #allocation4 [shape = 's32[1]{0}', space=sflag, size = 0x4, scoped, tag = 'scoped memory for tpu_custom_call.1']
    #allocation5 [shape = 'u8[16384]{0}', space=vmem, size = 0x4000, scoped, tag = 'input window, operand 1, single buffered']
    #allocation6 [shape = 's32[1]{0}', space=sflag, size = 0x4, scoped, tag = 'scoped memory for tpu_custom_call.1']
    #allocation7 [shape = 'u8[4096]{0}', space=vmem, size = 0x1000, scoped, tag = 'input window, operand 4, single buffered']
    #allocation8 [shape = 'u8[4096]{0}', space=vmem, size = 0x1000, scoped, tag = 'output window, operand 0, single buffered']
    %10 = vsyncpa [#allocation3], 0
    %11 = vsyncpa [#allocation6], 0
    %12 = vsyncpa [#allocation4], 0
    // Predicated region
    $region2: #{tpu_custom_call.1} parent=1 // pred_check
      _
    $region3: #{tpu_custom_call.1} parent=1 // pred_check_branch
      %14 = sbr.rel (0) target = $region5
    $region4: #{tpu_custom_call.1} parent=1 // pred_region
      %16 = vsyncadd [#allocation3], 0
      %s18 = sshll.u32 %s0, 4
      %s19 = int_to_ptr.hbm [resolvable:$true] %s18
      %s20 = sshll.u32 [#allocation2], 4
      %s21 = int_to_ptr.vmem [resolvable:$true] %s20
      %23 = dma.hbm_to_vmem [thread:$0]  %s19, 128, %s21, [#allocation3]
    $region5: #{tpu_custom_call.1} parent=1 // pred_fallthru
      _
    // Predicated region
    $region6: #{tpu_custom_call.1} parent=1 // pred_check
      _
    $region7: #{tpu_custom_call.1} parent=1 // pred_check_branch
      %25 = sbr.rel (0) target = $region9
    $region8: #{tpu_custom_call.1} parent=1 // pred_region
      %27 = vsyncadd [#allocation6], 0
      %s28 = sshll.u32 %s1, 4
      %s29 = int_to_ptr.hbm [resolvable:$true] %s28
      %s30 = sshll.u32 [#allocation5], 4
      %s31 = int_to_ptr.vmem [resolvable:$true] %s30
      %36 = dma.hbm_to_vmem [thread:$0]  %s29, 512, %s31, [#allocation6], 128, 128, 8
    $region9: #{tpu_custom_call.1} parent=1 // pred_fallthru
      _
    // Predicated region
    $region10: #{tpu_custom_call.1} parent=1 // pred_check
      _
    $region11: #{tpu_custom_call.1} parent=1 // pred_check_branch
      %38 = sbr.rel (0) target = $region13
    $region12: #{tpu_custom_call.1} parent=1 // pred_region
      _
    $region13: #{tpu_custom_call.1} parent=1 // pred_fallthru
      _
    // Predicated region
    $region14: #{tpu_custom_call.1} parent=1 // pred_check
      _
    $region15: #{tpu_custom_call.1} parent=1 // pred_check_branch
      %40 = sbr.rel (0) target = $region17
    $region16: #{tpu_custom_call.1} parent=1 // pred_region
      _
    $region17: #{tpu_custom_call.1} parent=1 // pred_fallthru
      _
    // Predicated region
    $region18: #{tpu_custom_call.1} parent=1 // pred_check
      _
    $region19: #{tpu_custom_call.1} parent=1 // pred_check_branch
      %42 = sbr.rel (0) target = $region21
    $region20: #{tpu_custom_call.1} parent=1 // pred_region
      %44 = vsyncadd [#allocation6], 0
      %s46 = sshll.u32 %s4, 4
      %s47 = int_to_ptr.hbm [resolvable:$true] %s46
      %s48 = sshll.u32 [#allocation7], 4
      %s49 = int_to_ptr.vmem [resolvable:$true] %s48
      %51 = dma.hbm_to_vmem [thread:$0]  %s47, 128, %s49, [#allocation6]
    $region21: #{tpu_custom_call.1} parent=1 // pred_fallthru
      _
    // Predicated region
    $region22: #{tpu_custom_call.1} parent=1 // pred_check
      _
    $region23: #{tpu_custom_call.1} parent=1 // pred_check_branch
      %53 = sbr.rel (0) target = $region25
    $region24: #{tpu_custom_call.1} parent=1 // pred_region
      %55 = dma.done [#allocation3], 128
    $region25: #{tpu_custom_call.1} parent=1 // pred_fallthru
      _
    // Predicated region
    $region26: #{tpu_custom_call.1} parent=1 // pred_check
      _
    $region27: #{tpu_custom_call.1} parent=1 // pred_check_branch
      %57 = sbr.rel (0) target = $region29
    $region28: #{tpu_custom_call.1} parent=1 // pred_region
      %59 = dma.done [#allocation6], 512
    $region29: #{tpu_custom_call.1} parent=1 // pred_fallthru
      _
    // Predicated region
    $region30: #{tpu_custom_call.1} parent=1 // pred_check
      _
    $region31: #{tpu_custom_call.1} parent=1 // pred_check_branch
      %61 = sbr.rel (0) target = $region33
    $region32: #{tpu_custom_call.1} parent=1 // pred_region
      %63 = dma.done [#allocation6], 128
    $region33: #{tpu_custom_call.1} parent=1 // pred_fallthru
      _
    %v64 = vld [vmem:[#allocation2] sm:$0xff]
    %v65 = vld [vmem:[#allocation5] sm:$0xff]
    %v66 = vld [vmem:[#allocation5 + $0x8] sm:$0xff]
    %v67 = vld [vmem:[#allocation5 + $0x10] sm:$0xff]
    %v68 = vld [vmem:[#allocation5 + $0x18] sm:$0xff]
    %vm69 = vcmask 261120
    %v71 = vsel %vm69, %v64, 0
    %73 = vmatpush.msra.mxu0 0.0
    %74 = vmatpush.msra.mxu0 0.0
    %75 = vmatpush.msra.mxu0 0.0
    %76 = vmatpush.msra.mxu0 0.0
    %77 = vmatpush.msra.mxu0 0.0
    %78 = vmatpush.msra.mxu0 0.0
    %79 = vmatpush.msra.mxu0 0.0
    %80 = vmatpush.msra.mxu0 0.0
    %81 = vmatpush.msra.mxu0 0.0
    %82 = vmatpush.msra.mxu0 0.0
    %83 = vmatpush.msra.mxu0 0.0
    %84 = vmatpush.msra.mxu0 0.0
    %85 = vmatpush.msra.mxu0 %v68
    %86 = vmatpush.msra.mxu0 %v67
    %87 = vmatpush.msra.mxu0 %v66
    %88 = vmatpush.msra.mxu0 %v65
    %89 = vmatmul.f32.gmra.mxu0 %v71
    %v90 = vpop.f32.mrf.mxu0
    %v91 = vadd.f32 0.0, %v90
    %92 = vdwg.mxu0
    %v93 = vrot.slane %v91, 4
    %v94 = vadd.f32 %v91, %v93
    %v95 = vrot.slane %v94, 2
    %v96 = vadd.f32 %v94, %v95
    %v97 = vrot.slane %v96, 1
    %v98 = vadd.f32 %v96, %v97
    %v99 = vmul.f32 %v98, 0.125
    %v100 = vmul.f32 %v91, %v91
    %v101 = vrot.slane %v100, 4
    %v102 = vadd.f32 %v100, %v101
    %v103 = vrot.slane %v102, 2
    %v104 = vadd.f32 %v102, %v103
    %v105 = vrot.slane %v104, 1
    %v106 = vadd.f32 %v104, %v105
    %v107 = vmul.f32 %v106, 0.125
    %v108 = vmul.f32 %v99, %v99
    %v109 = vsub.f32 %v107, %v108
    %v110 = vmax.f32 %v109, 0.0
    %v111 = vld [vmem:[%s2] sm:$0x1]
    %v112 = vadd.f32 %v110, 1e-05
    %v113 = vrsqrt.pop %v112
    %v114 = vmul.f32 %v113, %v112
    %v115 = vmul.f32 %v114, %v113
    %v116 = vmul.f32 0.5, %v115
    %v117 = vsub.f32 1.5, %v116
    %v118 = vmul.f32 %v113, %v117
    %vm119 = vweird.f32 %v112
    %vm120 = vweird.f32 %v113
    %vm121 = vmor %vm119, %vm120
    %v122 = vsel %vm121, %v113, %v118
    %v123 = vmul.f32 %v111, %v122
    %v124 = vld [vmem:[%s3] sm:$0x1]
    %v125 = vmul.f32 %v99, %v123
    %v126 = vsub.f32 %v124, %v125
    %v128 = vperm.slane %v123, 0
    %v130 = vmul.f32 %v91, %v128
    %v132 = vperm.slane %v126, 0
    %v134 = vadd.f32 %v130, %v132
    %135 = vst [vmem:[#allocation8] sm:$0xff] %v134
    // Predicated region
    $region34: #{tpu_custom_call.1} parent=1 // pred_check
      _
    $region35: #{tpu_custom_call.1} parent=1 // pred_check_branch
      %137 = sbr.rel (0) target = $region37
    $region36: #{tpu_custom_call.1} parent=1 // pred_region
      %139 = vsyncadd [#allocation4], 0
      %s141 = sshll.u32 [#allocation8], 4
      %s142 = int_to_ptr.vmem [resolvable:$true] %s141
      %s143 = sshll.u32 %s5, 4
      %s144 = int_to_ptr.hbm [resolvable:$true] %s143
      %146 = dma.vmem_to_hbm [thread:$0]  %s142, 128, %s144, [#allocation4]
    $region37: #{tpu_custom_call.1} parent=1 // pred_fallthru
      _
    // Predicated region
    $region38: #{tpu_custom_call.1} parent=1 // pred_check
      _
    $region39: #{tpu_custom_call.1} parent=1 // pred_check_branch
      %148 = sbr.rel (0) target = $region41
    $region40: #{tpu_custom_call.1} parent=1 // pred_region
      %150 = dma.done [#allocation4], 128
    $region41: #{tpu_custom_call.1} parent=1 // pred_fallthru
      _
    %151 = vsyncpa [#allocation3], 1
    %152 = vsyncpa [#allocation6], 1
    %153 = vsyncpa [#allocation4], 1

</llo_original>
